<compile_context>
chip_gen: v5e
topology: v5e:2x2
jax: 0.10.0
libtpu: 0.0.40
codegen_flags: <defaults>
</compile_context>

<pallas_src>
import functools

import numpy as np
import jax
import jax.numpy as jnp
from jax.experimental import pallas as pl
from jax.experimental.pallas import tpu as pltpu


# Network dims (PyTorch spec): image_size -> 128 -> 64 -> 10 -> 10 -> 10 -> 10
_OUT_DIMS = (128, 64, 10, 10, 10, 10)
_LANES = 128            # every layer's output is padded to 128 lanes (lane-dense)
_NEG_INF = -1.0e9       # pad-lane bias of the final layer (killed by softmax)


def _round_up(x, m):
    return (x + m - 1) // m * m


def _layer_row_offsets(image_size):
    # rows of the packed weight buffer assigned to each layer's K dimension:
    # layer 0 uses the raw image_size rows, layers 1..5 are padded to 128 rows
    ks = (image_size,) + (_LANES,) * 5
    offs, total = [], 0
    for k in ks:
        offs.append(total)
        total += k
    return tuple(offs), total


def _mlp_kernel(x_ref, w_ref, b_ref, o_ref, *, row_offs):
    # x_ref: (TB, image_size) f32 ; w_ref: (R, 128) bf16 ; b_ref: (8, 128) f32
    # o_ref: (TB, 128) f32  (lane-dense; only lanes [:10] are meaningful)

    def layer(h, idx, k_rows, apply_sigmoid):
        off = row_offs[idx]
        w = w_ref[off:off + k_rows, :]              # static slice, bf16
        b = b_ref[idx:idx + 1, :]                   # (1, 128) f32
        y = jnp.dot(h.astype(jnp.bfloat16), w,
                    preferred_element_type=jnp.float32) + b
        return jax.nn.sigmoid(y) if apply_sigmoid else y

    h = x_ref[...]                                  # (TB, image_size) f32
    h = layer(h, 0, x_ref.shape[1], True)           # fc0 + sigmoid
    for i in range(1, 5):                           # fc1..fc4 + sigmoid
        h = layer(h, i, _LANES, True)
    logits = layer(h, 5, _LANES, False)             # fc5 (pad lanes ~= -1e9)

    # numerically stable log_softmax over the feature axis; padded lanes
    # contribute exp(-1e9) == 0 to the sum and are sliced off in the wrapper.
    m = jnp.max(logits, axis=-1, keepdims=True)
    shifted = logits - m
    lse = jnp.log(jnp.sum(jnp.exp(shifted), axis=-1, keepdims=True))
    o_ref[...] = shifted - lse


def pack_params(params, image_size):
    """params: list of (W [in, out], b [out]) f32 arrays (i.e. PyTorch W.T)."""
    row_offs, total_rows = _layer_row_offsets(image_size)
    wbuf = np.zeros((total_rows, _LANES), np.float32)
    bbuf = np.zeros((8, _LANES), np.float32)
    bbuf[5, :] = _NEG_INF                          # final layer: mask pad lanes
    for i, (w, b) in enumerate(params):
        fan_in, fan_out = w.shape
        wbuf[row_offs[i]:row_offs[i] + fan_in, :fan_out] = np.asarray(w)
        bbuf[i, :fan_out] = np.asarray(b).reshape(-1)
    return jnp.asarray(wbuf, jnp.bfloat16), jnp.asarray(bbuf, jnp.float32)


def mlp_forward(x, wbuf, bbuf, image_size, *, block_batch=512):
    """x: anything reshapeable to [-1, image_size]; returns [B, 10] log-probs."""
    x = x.reshape(-1, image_size).astype(jnp.float32)
    b = x.shape[0]
    tb = min(block_batch, _round_up(b, 8))          # batch tile (sublane-aligned)
    pb = _round_up(b, tb)
    if pb != b:
        x = jnp.pad(x, ((0, pb - b), (0, 0)))

    row_offs, total_rows = _layer_row_offsets(image_size)
    n_classes = _OUT_DIMS[-1]

    flops = 2 * pb * (image_size * 128 + 128 * 64 + 64 * 10 + 3 * 10 * 10)
    transcendentals = pb * (128 + 64 + 3 * 10 + 10 + 1)
    bytes_accessed = (pb * image_size * 4 + total_rows * _LANES * 2
                      + 8 * _LANES * 4 + pb * _LANES * 4)

    out = pl.pallas_call(
        functools.partial(_mlp_kernel, row_offs=row_offs),
        out_shape=jax.ShapeDtypeStruct((pb, _LANES), jnp.float32),
        grid=(pb // tb,),
        in_specs=[
            # activations: tiled over batch (Pallas double-buffers these tiles)
            pl.BlockSpec((tb, image_size), lambda i: (i, 0)),
            # packed weights / biases: constant index_map -> VMEM-resident
            pl.BlockSpec((total_rows, _LANES), lambda i: (0, 0)),
            pl.BlockSpec((8, _LANES), lambda i: (0, 0)),
        ],
        out_specs=pl.BlockSpec((tb, _LANES), lambda i: (i, 0)),
        compiler_params=pltpu.CompilerParams(
            dimension_semantics=("parallel",)),
        cost_estimate=pl.CostEstimate(
            flops=flops,
            transcendentals=transcendentals,
            bytes_accessed=bytes_accessed),
    )(x, wbuf, bbuf)

    return out[:b, :n_classes]


def init_params(key, image_size):
    """Deterministic init matching the PyTorch Linear shapes (stored as [in, out])."""
    dims = [(image_size, 128), (128, 64), (64, 10), (10, 10), (10, 10), (10, 10)]
    params = []
    for fan_in, fan_out in dims:
        key, kw, kb = jax.random.split(key, 3)
        bound = float(1.0 / np.sqrt(fan_in))
        w = jax.random.uniform(kw, (fan_in, fan_out), jnp.float32, -bound, bound)
        b = jax.random.uniform(kb, (fan_out,), jnp.float32, -bound, bound)
        params.append((w, b))
    return params


def reference_forward(x, params, image_size):
    h = x.reshape(-1, image_size).astype(jnp.float32)
    for i, (w, b) in enumerate(params):
        h = h @ w + b
        if i < 5:
            h = jax.nn.sigmoid(h)
    return jax.nn.log_softmax(h, axis=-1)


if __name__ == "__main__":
    image_size = 32
    batch = 32

    key = jax.random.PRNGKey(0)
    key, kx = jax.random.split(key)
    # Input could be e.g. [batch, 1, H, W]; the module flattens to [-1, image_size].
    x = jax.random.normal(kx, (batch, 1, 4, 8), jnp.float32)

    params = init_params(key, image_size)
    wbuf, bbuf = pack_params(params, image_size)

    # block_batch=16 -> a 2-step batch grid to exercise the pipeline; production
    # use would keep the default (512) for large batches.
    out = mlp_forward(x, wbuf, bbuf, image_size, block_batch=16)
    out = jax.block_until_ready(out)

    assert out.shape == (batch, 10)
    # log_softmax rows should exp-sum to 1
    row_sums = jnp.sum(jnp.exp(out), axis=1)
    assert jnp.allclose(row_sums, jnp.ones_like(row_sums), atol=1e-3)

    # end-to-end check against a pure-JAX f32 reference (bf16 matmul tolerance)
    ref = reference_forward(x, params, image_size)
    assert jnp.allclose(out, ref, atol=1e-1), float(jnp.max(jnp.abs(out - ref)))

    print("KERNEL_OK")
</pallas_src>

<mosaic_0001>
module attributes {stable_mosaic.version = 11 : i64} {
  func.func @_mlp_kernel(%arg0: i32, %arg1: memref<16x32xf32, #tpu.memory_space<vmem>>, %arg2: memref<672x128xbf16, #tpu.memory_space<vmem>>, %arg3: memref<8x128xf32, #tpu.memory_space<vmem>>, %arg4: memref<16x128xf32, #tpu.memory_space<vmem>>) attributes {dimension_semantics = [#tpu.dimension_semantics<parallel>], iteration_bounds = array<i64: 2>, scalar_prefetch = 0 : i64, scratch_operands = 0 : i64, tpu.core_type = #tpu.core_type<tc>, window_params = [{transform_indices = @transform_0, window_bounds = array<i64: 16, 32>}, {pipeline_mode = #tpu.pipeline_mode<synchronous>, transform_indices = @transform_1, window_bounds = array<i64: 672, 128>}, {pipeline_mode = #tpu.pipeline_mode<synchronous>, transform_indices = @transform_2, window_bounds = array<i64: 8, 128>}, {transform_indices = @transform_3, window_bounds = array<i64: 16, 128>}]} {
    %c0 = arith.constant 0 : index
    %c0_0 = arith.constant 0 : index
    %0 = vector.load %arg1[%c0, %c0_0] : memref<16x32xf32, #tpu.memory_space<vmem>>, vector<16x32xf32>
    %c0_1 = arith.constant 0 : index
    %c0_2 = arith.constant 0 : index
    %1 = vector.load %arg2[%c0_1, %c0_2] : memref<672x128xbf16, #tpu.memory_space<vmem>>, vector<32x128xbf16>
    %c0_3 = arith.constant 0 : index
    %c0_4 = arith.constant 0 : index
    %2 = vector.load %arg3[%c0_3, %c0_4] : memref<8x128xf32, #tpu.memory_space<vmem>>, vector<1x128xf32>
    %3 = arith.truncf %0 : vector<16x32xf32> to vector<16x32xbf16>
    %cst = arith.constant dense<0.000000e+00> : vector<16x128xf32>
    %4 = tpu.matmul %3, %1, %cst {dimension_numbers = #tpu.dot_dimension_numbers<[1], [0], [0], [1], [0, 0, 1, 1], [], []>} : vector<16x32xbf16>, vector<32x128xbf16>, vector<16x128xf32> -> vector<16x128xf32>
    %5 = vector.broadcast %2 : vector<1x128xf32> to vector<16x128xf32>
    %6 = arith.addf %4, %5 : vector<16x128xf32>
    %7 = arith.negf %6 : vector<16x128xf32>
    %8 = math.exp %7 : vector<16x128xf32>
    %cst_5 = arith.constant 1.000000e+00 : f32
    %9 = vector.broadcast %cst_5 : f32 to vector<16x128xf32>
    %10 = arith.addf %9, %8 : vector<16x128xf32>
    %11 = arith.divf %9, %10 : vector<16x128xf32>
    %c32 = arith.constant 32 : index
    %c0_6 = arith.constant 0 : index
    %12 = vector.load %arg2[%c32, %c0_6] : memref<672x128xbf16, #tpu.memory_space<vmem>>, vector<128x128xbf16>
    %c1 = arith.constant 1 : index
    %c0_7 = arith.constant 0 : index
    %13 = vector.load %arg3[%c1, %c0_7] : memref<8x128xf32, #tpu.memory_space<vmem>>, vector<1x128xf32>
    %14 = arith.truncf %11 : vector<16x128xf32> to vector<16x128xbf16>
    %cst_8 = arith.constant dense<0.000000e+00> : vector<16x128xf32>
    %15 = tpu.matmul %14, %12, %cst_8 {dimension_numbers = #tpu.dot_dimension_numbers<[1], [0], [0], [1], [0, 0, 1, 1], [], []>} : vector<16x128xbf16>, vector<128x128xbf16>, vector<16x128xf32> -> vector<16x128xf32>
    %16 = vector.broadcast %13 : vector<1x128xf32> to vector<16x128xf32>
    %17 = arith.addf %15, %16 : vector<16x128xf32>
    %18 = arith.negf %17 : vector<16x128xf32>
    %19 = math.exp %18 : vector<16x128xf32>
    %cst_9 = arith.constant 1.000000e+00 : f32
    %20 = vector.broadcast %cst_9 : f32 to vector<16x128xf32>
    %21 = arith.addf %20, %19 : vector<16x128xf32>
    %22 = arith.divf %20, %21 : vector<16x128xf32>
    %c160 = arith.constant 160 : index
    %c0_10 = arith.constant 0 : index
    %23 = vector.load %arg2[%c160, %c0_10] : memref<672x128xbf16, #tpu.memory_space<vmem>>, vector<128x128xbf16>
    %c2 = arith.constant 2 : index
    %c0_11 = arith.constant 0 : index
    %24 = vector.load %arg3[%c2, %c0_11] : memref<8x128xf32, #tpu.memory_space<vmem>>, vector<1x128xf32>
    %25 = arith.truncf %22 : vector<16x128xf32> to vector<16x128xbf16>
    %cst_12 = arith.constant dense<0.000000e+00> : vector<16x128xf32>
    %26 = tpu.matmul %25, %23, %cst_12 {dimension_numbers = #tpu.dot_dimension_numbers<[1], [0], [0], [1], [0, 0, 1, 1], [], []>} : vector<16x128xbf16>, vector<128x128xbf16>, vector<16x128xf32> -> vector<16x128xf32>
    %27 = vector.broadcast %24 : vector<1x128xf32> to vector<16x128xf32>
    %28 = arith.addf %26, %27 : vector<16x128xf32>
    %29 = arith.negf %28 : vector<16x128xf32>
    %30 = math.exp %29 : vector<16x128xf32>
    %cst_13 = arith.constant 1.000000e+00 : f32
    %31 = vector.broadcast %cst_13 : f32 to vector<16x128xf32>
    %32 = arith.addf %31, %30 : vector<16x128xf32>
    %33 = arith.divf %31, %32 : vector<16x128xf32>
    %c288 = arith.constant 288 : index
    %c0_14 = arith.constant 0 : index
    %34 = vector.load %arg2[%c288, %c0_14] : memref<672x128xbf16, #tpu.memory_space<vmem>>, vector<128x128xbf16>
    %c3 = arith.constant 3 : index
    %c0_15 = arith.constant 0 : index
    %35 = vector.load %arg3[%c3, %c0_15] : memref<8x128xf32, #tpu.memory_space<vmem>>, vector<1x128xf32>
    %36 = arith.truncf %33 : vector<16x128xf32> to vector<16x128xbf16>
    %cst_16 = arith.constant dense<0.000000e+00> : vector<16x128xf32>
    %37 = tpu.matmul %36, %34, %cst_16 {dimension_numbers = #tpu.dot_dimension_numbers<[1], [0], [0], [1], [0, 0, 1, 1], [], []>} : vector<16x128xbf16>, vector<128x128xbf16>, vector<16x128xf32> -> vector<16x128xf32>
    %38 = vector.broadcast %35 : vector<1x128xf32> to vector<16x128xf32>
    %39 = arith.addf %37, %38 : vector<16x128xf32>
    %40 = arith.negf %39 : vector<16x128xf32>
    %41 = math.exp %40 : vector<16x128xf32>
    %cst_17 = arith.constant 1.000000e+00 : f32
    %42 = vector.broadcast %cst_17 : f32 to vector<16x128xf32>
    %43 = arith.addf %42, %41 : vector<16x128xf32>
    %44 = arith.divf %42, %43 : vector<16x128xf32>
    %c416 = arith.constant 416 : index
    %c0_18 = arith.constant 0 : index
    %45 = vector.load %arg2[%c416, %c0_18] : memref<672x128xbf16, #tpu.memory_space<vmem>>, vector<128x128xbf16>
    %c4 = arith.constant 4 : index
    %c0_19 = arith.constant 0 : index
    %46 = vector.load %arg3[%c4, %c0_19] : memref<8x128xf32, #tpu.memory_space<vmem>>, vector<1x128xf32>
    %47 = arith.truncf %44 : vector<16x128xf32> to vector<16x128xbf16>
    %cst_20 = arith.constant dense<0.000000e+00> : vector<16x128xf32>
    %48 = tpu.matmul %47, %45, %cst_20 {dimension_numbers = #tpu.dot_dimension_numbers<[1], [0], [0], [1], [0, 0, 1, 1], [], []>} : vector<16x128xbf16>, vector<128x128xbf16>, vector<16x128xf32> -> vector<16x128xf32>
    %49 = vector.broadcast %46 : vector<1x128xf32> to vector<16x128xf32>
    %50 = arith.addf %48, %49 : vector<16x128xf32>
    %51 = arith.negf %50 : vector<16x128xf32>
    %52 = math.exp %51 : vector<16x128xf32>
    %cst_21 = arith.constant 1.000000e+00 : f32
    %53 = vector.broadcast %cst_21 : f32 to vector<16x128xf32>
    %54 = arith.addf %53, %52 : vector<16x128xf32>
    %55 = arith.divf %53, %54 : vector<16x128xf32>
    %c544 = arith.constant 544 : index
    %c0_22 = arith.constant 0 : index
    %56 = vector.load %arg2[%c544, %c0_22] : memref<672x128xbf16, #tpu.memory_space<vmem>>, vector<128x128xbf16>
    %c5 = arith.constant 5 : index
    %c0_23 = arith.constant 0 : index
    %57 = vector.load %arg3[%c5, %c0_23] : memref<8x128xf32, #tpu.memory_space<vmem>>, vector<1x128xf32>
    %58 = arith.truncf %55 : vector<16x128xf32> to vector<16x128xbf16>
    %cst_24 = arith.constant dense<0.000000e+00> : vector<16x128xf32>
    %59 = tpu.matmul %58, %56, %cst_24 {dimension_numbers = #tpu.dot_dimension_numbers<[1], [0], [0], [1], [0, 0, 1, 1], [], []>} : vector<16x128xbf16>, vector<128x128xbf16>, vector<16x128xf32> -> vector<16x128xf32>
    %60 = vector.broadcast %57 : vector<1x128xf32> to vector<16x128xf32>
    %61 = arith.addf %59, %60 : vector<16x128xf32>
    %cst_25 = arith.constant dense<0xFF800000> : vector<16xf32>
    %62 = vector.multi_reduction <maximumf>, %61, %cst_25 [1] : vector<16x128xf32> to vector<16xf32>
    %63 = vector.shape_cast %62 : vector<16xf32> to vector<16x1xf32>
    %64 = vector.broadcast %63 : vector<16x1xf32> to vector<16x128xf32>
    %65 = arith.subf %61, %64 : vector<16x128xf32>
    %66 = math.exp %65 : vector<16x128xf32>
    %cst_26 = arith.constant dense<0.000000e+00> : vector<16xf32>
    %67 = vector.multi_reduction <add>, %66, %cst_26 [1] : vector<16x128xf32> to vector<16xf32>
    %68 = vector.shape_cast %67 : vector<16xf32> to vector<16x1xf32>
    %69 = math.log %68 : vector<16x1xf32>
    %70 = vector.broadcast %69 : vector<16x1xf32> to vector<16x128xf32>
    %71 = arith.subf %65, %70 : vector<16x128xf32>
    %c0_27 = arith.constant 0 : index
    %c0_28 = arith.constant 0 : index
    %72 = vector.load %arg4[%c0_27, %c0_28] : memref<16x128xf32, #tpu.memory_space<vmem>>, vector<16x128xf32>
    tpu.vector_store %arg4[%c0_27, %c0_28], %71 {strides = array<i32>} : memref<16x128xf32, #tpu.memory_space<vmem>>, vector<16x128xf32>,
    return
  }
  func.func @transform_0(%arg0: i32) -> (i32, i32) {
    %c0_i32 = arith.constant 0 : i32
    %c0_i32_0 = arith.constant 0 : i32
    return %arg0, %c0_i32 : i32, i32
  }
  func.func @transform_1(%arg0: i32) -> (i32, i32) {
    %c0_i32 = arith.constant 0 : i32
    %c0_i32_0 = arith.constant 0 : i32
    %c0_i32_1 = arith.constant 0 : i32
    return %c0_i32, %c0_i32_0 : i32, i32
  }
  func.func @transform_2(%arg0: i32) -> (i32, i32) {
    %c0_i32 = arith.constant 0 : i32
    %c0_i32_0 = arith.constant 0 : i32
    %c0_i32_1 = arith.constant 0 : i32
    return %c0_i32, %c0_i32_0 : i32, i32
  }
  func.func @transform_3(%arg0: i32) -> (i32, i32) {
    %c0_i32 = arith.constant 0 : i32
    %c0_i32_0 = arith.constant 0 : i32
    return %arg0, %c0_i32 : i32, i32
  }
}

</mosaic_0001>

<llo_original>
// kernel: tpu_custom_call.1
$region0: #{tpu_custom_call.1}
  #allocation0 [shape = 'u32[]', space=smem, size = 0x4, offset = 0x4, fixed_abs, tag = 'smem constant byte address 0x4 - core index']
  #allocation1 [shape = 'u32[72,128]{1,0:T(1,128)}', space=vmem, size = 0x9000, scoped, tag = 'internal scratch']
  %s0 = inlined_call_operand.hbm [shape: f32[32,32], index: 0, kind: input, shape index: {}]
  %s1 = inlined_call_operand.hbm [shape: bf16[672,128], index: 1, kind: input, shape index: {}]
  %s2 = inlined_call_operand.hbm [shape: f32[8,128], index: 2, kind: input, shape index: {}]
  %s3 = inlined_call_operand.hbm [shape: f32[32,128], index: 3, kind: output, shape index: {}]
  %s4 = sld [smem:[#allocation0]]
  $region57: #{tpu_custom_call.1} parent=0
    _
  %s6 = ssub.s32 1, %s4
  %s7 = scalar_select 0, %s6, %s4
  $region1: #{tpu_custom_call.1} parent=0
    #allocation2 [shape = 'u8[16384]{0}', space=vmem, size = 0x4000, scoped, tag = 'input window, operand 0']
    #allocation3 [shape = 's32[2]{0}', space=sflag, size = 0x8, scoped, tag = 'scoped memory for tpu_custom_call.1']
    #allocation4 [shape = 's32[2]{0}', space=sflag, size = 0x8, scoped, tag = 'scoped memory for tpu_custom_call.1']
    #allocation5 [shape = 'u8[172032]{0}', space=vmem, size = 0x2a000, scoped, tag = 'input window, operand 1, single buffered']
    #allocation6 [shape = 's32[1]{0}', space=sflag, size = 0x4, scoped, tag = 'scoped memory for tpu_custom_call.1']
    #allocation7 [shape = 'u8[4096]{0}', space=vmem, size = 0x1000, scoped, tag = 'input window, operand 2, single buffered']
    #allocation8 [shape = 'u8[16384]{0}', space=vmem, size = 0x4000, scoped, tag = 'output window, operand 0']
    %8 = vsyncpa [#allocation3], 0
    %s9 = scalar_lea.sflag [#allocation3], 1
    %10 = vsyncpa %s9, 0
    %11 = vsyncpa [#allocation6], 0
    %12 = vsyncpa [#allocation4], 0
    %s13 = scalar_lea.sflag [#allocation4], 1
    %14 = vsyncpa %s13, 0
    loop: start=0, step=1, limit=4
    $region2: #{tpu_custom_call.1} parent=1 // loop_pre_header
      _
    $region3: #{tpu_custom_call.1} parent=1 // loop_header
      %s16 = sphi 0, %s20
      %p17 = scmp.ge.s32.totalorder %s16, 4
      %s26 = sphi 0, %s28
      %s29 = sphi 0, %s26
      %s30 = sphi 0, %s29
      %s46 = sphi 0, %s30
      %s50 = sphi 0, %s50
      %s52 = sphi 0, %s50
      %s53 = sphi 0, %s52
      %s67 = sphi 0, %s53
      %s71 = sphi 0, %s71
      %s73 = sphi 0, %s71
      %s74 = sphi 0, %s73
      %s88 = sphi 0, %s74
      %s94 = sphi 0, %s96
      %s97 = sphi 0, %s94
      %s98 = sphi 0, %s97
      %s114 = sphi 0, %s98
    $region4: #{tpu_custom_call.1} parent=1 // loop_header_branch
      %19 = sbr.rel (%p17) target = $region8
    $region5: #{tpu_custom_call.1} parent=1 // loop_body
      %s21 = ssub.s32 %s16, 1
      %s22 = ssub.s32 %s16, 2
      %s23 = sadd.s32 %s16, 1
      %s24 = ssub.s32 %s16, %s23
      %p25 = scmp.eq.s32.totalorder %s24, 0
      %s27 = sadd.s32 %s26, 1
      %s28 = scalar_select %p25, %s26, %s27
      %p31 = pneg %p25
      %p32 = scmp.eq.s32.totalorder %s16, 1
      %p33 = por %p31, %p32
      %p34 = scmp.ne.s32.totalorder %s26, %s29
      %p35 = scmp.eq.s32.totalorder %s16, 0
      %p36 = por %p34, %p35
      %p37 = scmp.ne.s32.totalorder %s26, %s29
      %p38 = scmp.eq.s32.totalorder %s21, 1
      %p39 = por %p37, %p38
      %p40 = scmp.ne.s32.totalorder %s29, %s30
      %p41 = scmp.eq.s32.totalorder %s21, 0
      %p42 = por %p40, %p41
      %p43 = scmp.ne.s32.totalorder %s29, %s30
      %p44 = scmp.eq.s32.totalorder %s22, 1
      %p45 = por %p43, %p44
      %p47 = scmp.ne.s32.totalorder %s30, %s46
      %p48 = scmp.eq.s32.totalorder %s22, 0
      %p49 = por %p47, %p48
      %s51 = sadd.s32 %s50, 1
      %p54 = scmp.eq.s32.totalorder %s16, 1
      %p55 = scmp.ne.s32.totalorder %s50, %s52
      %p56 = scmp.eq.s32.totalorder %s16, 0
      %p57 = por %p55, %p56
      %p58 = scmp.ne.s32.totalorder %s50, %s52
      %p59 = scmp.eq.s32.totalorder %s21, 1
      %p60 = por %p58, %p59
      %p61 = scmp.ne.s32.totalorder %s52, %s53
      %p62 = scmp.eq.s32.totalorder %s21, 0
      %p63 = por %p61, %p62
      %p64 = scmp.ne.s32.totalorder %s52, %s53
      %p65 = scmp.eq.s32.totalorder %s22, 1
      %p66 = por %p64, %p65
      %p68 = scmp.ne.s32.totalorder %s53, %s67
      %p69 = scmp.eq.s32.totalorder %s22, 0
      %p70 = por %p68, %p69
      %s72 = sadd.s32 %s71, 1
      %p75 = scmp.eq.s32.totalorder %s16, 1
      %p76 = scmp.ne.s32.totalorder %s71, %s73
      %p77 = scmp.eq.s32.totalorder %s16, 0
      %p78 = por %p76, %p77
      %p79 = scmp.ne.s32.totalorder %s71, %s73
      %p80 = scmp.eq.s32.totalorder %s21, 1
      %p81 = por %p79, %p80
      %p82 = scmp.ne.s32.totalorder %s73, %s74
      %p83 = scmp.eq.s32.totalorder %s21, 0
      %p84 = por %p82, %p83
      %p85 = scmp.ne.s32.totalorder %s73, %s74
      %p86 = scmp.eq.s32.totalorder %s22, 1
      %p87 = por %p85, %p86
      %p89 = scmp.ne.s32.totalorder %s74, %s88
      %p90 = scmp.eq.s32.totalorder %s22, 0
      %p91 = por %p89, %p90
      %s92 = ssub.s32 %s16, %s23
      %p93 = scmp.eq.s32.totalorder %s92, 0
      %s95 = sadd.s32 %s94, 1
      %s96 = scalar_select %p93, %s94, %s95
      %p99 = pneg %p93
      %p100 = scmp.eq.s32.totalorder %s16, 1
      %p101 = por %p99, %p100
      %p102 = scmp.ne.s32.totalorder %s94, %s97
      %p103 = scmp.eq.s32.totalorder %s16, 0
      %p104 = por %p102, %p103
      %p105 = scmp.ne.s32.totalorder %s94, %s97
      %p106 = scmp.eq.s32.totalorder %s21, 1
      %p107 = por %p105, %p106
      %p108 = scmp.ne.s32.totalorder %s97, %s98
      %p109 = scmp.eq.s32.totalorder %s21, 0
      %p110 = por %p108, %p109
      %p111 = scmp.ne.s32.totalorder %s97, %s98
      %p112 = scmp.eq.s32.totalorder %s22, 1
      %p113 = por %p111, %p112
      %p115 = scmp.ne.s32.totalorder %s98, %s114
      %p116 = scmp.eq.s32.totalorder %s22, 0
      %p117 = por %p115, %p116
      %p118 = scmp.le.s32.totalorder 1, %s16
      %p119 = scmp.lt.s32.totalorder %s16, 3
      %p120 = pnand %p118, %p119
      %p121 = pneg %p120
      // Predicated region
      $region9: #{tpu_custom_call.1} parent=5 // pred_check
        _
      $region10: #{tpu_custom_call.1} parent=5 // pred_check_branch
        %123 = sbr.rel (%p120) target = $region12
      $region11: #{tpu_custom_call.1} parent=5 // pred_region
        %s124 = ssub.s32 %s16, 1
        // Predicated region
        $region13: #{tpu_custom_call.1} parent=11 // pred_check
          %p125 = pneg %p63
        $region14: #{tpu_custom_call.1} parent=11 // pred_check_branch
          %127 = sbr.rel (%p125) target = $region16
        $region15: #{tpu_custom_call.1} parent=11 // pred_region
          %129 = vsyncadd [#allocation6], 0
          %s130 = sshll.u32 %s1, 4
          %s131 = int_to_ptr.hbm [resolvable:$true] %s130
          %s132 = sshll.u32 [#allocation5], 4
          %s133 = int_to_ptr.vmem [resolvable:$true] %s132
          %138 = dma.hbm_to_vmem [thread:$0]  %s131, 5376, %s133, [#allocation6], 64, 64, 4
        $region16: #{tpu_custom_call.1} parent=11 // pred_fallthru
          _
        // Predicated region
        $region17: #{tpu_custom_call.1} parent=11 // pred_check
          %p139 = pneg %p84
        $region18: #{tpu_custom_call.1} parent=11 // pred_check_branch
          %141 = sbr.rel (%p139) target = $region20
        $region19: #{tpu_custom_call.1} parent=11 // pred_region
          %143 = vsyncadd [#allocation6], 0
          %s145 = sshll.u32 %s2, 4
          %s146 = int_to_ptr.hbm [resolvable:$true] %s145
          %s147 = sshll.u32 [#allocation7], 4
          %s148 = int_to_ptr.vmem [resolvable:$true] %s147
          %150 = dma.hbm_to_vmem [thread:$0]  %s146, 128, %s148, [#allocation6]
        $region20: #{tpu_custom_call.1} parent=11 // pred_fallthru
          _
      $region12: #{tpu_custom_call.1} parent=5 // pred_fallthru
        _
      %p151 = scmp.lt.s32.totalorder %s16, 2
      // Predicated region
      $region21: #{tpu_custom_call.1} parent=5 // pred_check
        %p152 = pneg %p151
      $region22: #{tpu_custom_call.1} parent=5 // pred_check_branch
        %154 = sbr.rel (%p152) target = $region24
      $region23: #{tpu_custom_call.1} parent=5 // pred_region
        // Predicated region
        $region25: #{tpu_custom_call.1} parent=23 // pred_check
          %p155 = pneg %p36
        $region26: #{tpu_custom_call.1} parent=23 // pred_check_branch
          %157 = sbr.rel (%p155) target = $region28
        $region27: #{tpu_custom_call.1} parent=23 // pred_region
          %s158 = sand.u32 %s26, 1
          %s159 = scalar_lea.sflag [#allocation3], %s158
          %s160 = sand.u32 %s26, 1
          %s161 = smul.addr %s160, 16
          %s162 = scalar_lea.vmem [#allocation2], %s161
          %s163 = smul.u32 2, %s16
          %165 = vsyncadd %s159, 0
          %s166 = smul.addr %s163, 8
          %s167 = scalar_lea.hbm %s0, %s166
          %s168 = sshll.u32 %s167, 4
          %s169 = int_to_ptr.hbm [resolvable:$true] %s168
          %s170 = sshll.u32 %s162, 4
          %s171 = int_to_ptr.vmem [resolvable:$true] %s170
          %176 = dma.hbm_to_vmem [thread:$0]  %s169, 256, %s171, %s159, 128, 128, 8
        $region28: #{tpu_custom_call.1} parent=23 // pred_fallthru
          _
      $region24: #{tpu_custom_call.1} parent=5 // pred_fallthru
        _
      %p177 = scmp.le.s32.totalorder 1, %s16
      %p178 = scmp.lt.s32.totalorder %s16, 3
      %p179 = pnand %p177, %p178
      %p180 = pneg %p179
      // Predicated region
      $region29: #{tpu_custom_call.1} parent=5 // pred_check
        _
      $region30: #{tpu_custom_call.1} parent=5 // pred_check_branch
        %182 = sbr.rel (%p179) target = $region32
      $region31: #{tpu_custom_call.1} parent=5 // pred_region
        %s183 = ssub.s32 %s16, 1
        %s184 = sand.u32 %s29, 1
        %s185 = scalar_lea.sflag [#allocation3], %s184
        %s186 = sand.u32 %s29, 1
        %s187 = smul.addr %s186, 16
        %s188 = scalar_lea.vmem [#allocation2], %s187
        // Predicated region
        $region33: #{tpu_custom_call.1} parent=31 // pred_check
          %p189 = pneg %p42
        $region34: #{tpu_custom_call.1} parent=31 // pred_check_branch
          %191 = sbr.rel (%p189) target = $region36
        $region35: #{tpu_custom_call.1} parent=31 // pred_region
          %193 = dma.done %s185, 256
        $region36: #{tpu_custom_call.1} parent=31 // pred_fallthru
          _
        // Predicated region
        $region37: #{tpu_custom_call.1} parent=31 // pred_check
          %p194 = pneg %p63
        $region38: #{tpu_custom_call.1} parent=31 // pred_check_branch
          %196 = sbr.rel (%p194) target = $region40
        $region39: #{tpu_custom_call.1} parent=31 // pred_region
          %198 = dma.done [#allocation6], 5376
        $region40: #{tpu_custom_call.1} parent=31 // pred_fallthru
          _
        // Predicated region
        $region41: #{tpu_custom_call.1} parent=31 // pred_check
          %p199 = pneg %p84
        $region42: #{tpu_custom_call.1} parent=31 // pred_check_branch
          %201 = sbr.rel (%p199) target = $region44
        $region43: #{tpu_custom_call.1} parent=31 // pred_region
          %203 = dma.done [#allocation6], 128
        $region44: #{tpu_custom_call.1} parent=31 // pred_fallthru
          _
        %s204 = sand.u32 %s29, 1
        %s205 = scalar_lea.sflag [#allocation3], %s204
        %s206 = sand.u32 %s29, 1
        %s207 = smul.addr %s206, 16
        %s208 = scalar_lea.vmem [#allocation2], %s207
        %p209 = pneg %p42
        %p210 = pneg %p39
        %p211 = pneg %p63
        %p212 = pneg %p60
        %p213 = pneg %p84
        %p214 = pneg %p81
        %p215 = pneg %p110
        %p216 = pneg %p107
        %s217 = sand.u32 %s97, 1
        %s218 = scalar_lea.sflag [#allocation4], %s217
        %s219 = sand.u32 %s97, 1
        %s220 = smul.addr %s219, 16
        %s221 = scalar_lea.vmem [#allocation8], %s220
        %s222 = smul.u32 2, %s21
        %s223 = smul.u32 2, %s21
        %v225 = vld [vmem:[%s188] sm:$0xff]
        %v226 = vld [vmem:[%s188 + $0x8] sm:$0xff]
        %v227 = vld [vmem:[#allocation5] sm:$0xf]
        %v228 = vld [vmem:[#allocation5 + $0x4] sm:$0xf]
        %v229 = vld [vmem:[#allocation5 + $0x8] sm:$0xf]
        %v230 = vld [vmem:[#allocation5 + $0xc] sm:$0xf]
        %v231 = vld [vmem:[#allocation7] sm:$0x1]
        %v232 = vpack.c.bf16 %v226, %v225
        %v233 = vperm.slane %v231, 0
        %v238 = vunpack.c.l.b16 %v227
        %v239 = vunpack.c.l.b16 %v228
        %v240 = vunpack.c.l.b16 %v229
        %v241 = vunpack.c.l.b16 %v230
        %v242 = vpack.c.b16 %v239, %v238
        %v243 = vpack.c.b16 %v241, %v240
        %vm246 = vcmask 261120
        %v248 = vsel %vm246, %v232, 0
        %250 = vmatpush.bf16.msra.mxu0 0
        %251 = vmatpush.bf16.msra.mxu0 0
        %252 = vmatpush.bf16.msra.mxu0 0
        %253 = vmatpush.bf16.msra.mxu0 0
        %254 = vmatpush.bf16.msra.mxu0 0
        %255 = vmatpush.bf16.msra.mxu0 0
        %256 = vmatpush.bf16.msra.mxu0 %v243
        %257 = vmatpush.bf16.msra.mxu0 %v242
        %258 = vmatmul.bf16.gmra.mxu0 %v248
        %v259 = vpop.f32.mrf.mxu0
        %v260 = vadd.f32 %v233, %v259
        %v261 = vpop.f32.mrf.mxu0
        %v262 = vadd.f32 %v233, %v261
        %263 = vdwg.mxu0
        %v264 = vxor.u32 %v260, 2147483648
        %v265 = vxor.u32 %v262, 2147483648
        %v266 = vmul.f32 %v264, 1.442695
        %v267 = vpow.pop %v266
        %v268 = vmul.f32 %v265, 1.442695
        %v269 = vpow.pop %v268
        %v270 = vadd.f32 %v267, 1.0
        %v271 = vadd.f32 %v269, 1.0
        %v272 = vrcp.pop %v270
        %v273 = vmul.f32 %v270, %v272
        %v274 = vsub.f32 1.0, %v273
        %v275 = vmul.f32 %v272, %v274
        %v276 = vadd.f32 %v272, %v275
        %vm277 = vweird.f32 %v270
        %vm278 = vweird.f32 %v272
        %vm279 = vmor %vm277, %vm278
        %v280 = vsel %vm279, %v272, %v276
        %v281 = vand.u32 2147483647, %v270
        %vm282 = vcmp.eq.f32.partialorder %v281, 8.507059e+37
        %v283 = vand.u32 %v270, 2147483648
        %v284 = vor.u32 1.1754944e-38, %v283
        %v285 = vsel %vm282, %v284, %v280
        %v286 = vmul.f32 1.0, %v285
        %v287 = vrcp.pop %v271
        %v288 = vmul.f32 %v271, %v287
        %v289 = vsub.f32 1.0, %v288
        %v290 = vmul.f32 %v287, %v289
        %v291 = vadd.f32 %v287, %v290
        %vm292 = vweird.f32 %v271
        %vm293 = vweird.f32 %v287
        %vm294 = vmor %vm292, %vm293
        %v295 = vsel %vm294, %v287, %v291
        %v296 = vand.u32 2147483647, %v271
        %vm297 = vcmp.eq.f32.partialorder %v296, 8.507059e+37
        %v298 = vand.u32 %v271, 2147483648
        %v299 = vor.u32 1.1754944e-38, %v298
        %v300 = vsel %vm297, %v299, %v295
        %v301 = vmul.f32 1.0, %v300
        %v302 = vld [vmem:[#allocation5 + $0x10] sm:$0xf]
        %v303 = vld [vmem:[#allocation5 + $0x14] sm:$0xf]
        %v304 = vld [vmem:[#allocation5 + $0x18] sm:$0xf]
        %v305 = vld [vmem:[#allocation5 + $0x1c] sm:$0xf]
        %v306 = vld [vmem:[#allocation5 + $0x20] sm:$0xf]
        %v307 = vld [vmem:[#allocation5 + $0x24] sm:$0xf]
        %v308 = vld [vmem:[#allocation5 + $0x28] sm:$0xf]
        %v309 = vld [vmem:[#allocation5 + $0x2c] sm:$0xf]
        %v310 = vld [vmem:[#allocation5 + $0x30] sm:$0xf]
        %v311 = vld [vmem:[#allocation5 + $0x34] sm:$0xf]
        %v312 = vld [vmem:[#allocation5 + $0x38] sm:$0xf]
        %v313 = vld [vmem:[#allocation5 + $0x3c] sm:$0xf]
        %v314 = vld [vmem:[#allocation5 + $0x40] sm:$0xf]
        %v315 = vld [vmem:[#allocation5 + $0x44] sm:$0xf]
        %v316 = vld [vmem:[#allocation5 + $0x48] sm:$0xf]
        %v317 = vld [vmem:[#allocation5 + $0x4c] sm:$0xf]
        %v318 = vld [vmem:[#allocation7 + $0x1] sm:$0x1]
        %v319 = vpack.c.bf16 %v301, %v286
        %v320 = vperm.slane %v318, 0
        %v337 = vunpack.c.l.b16 %v302
        %v338 = vunpack.c.l.b16 %v303
        %v339 = vunpack.c.l.b16 %v304
        %v340 = vunpack.c.l.b16 %v305
        %v341 = vunpack.c.l.b16 %v306
        %v342 = vunpack.c.l.b16 %v307
        %v343 = vunpack.c.l.b16 %v308
        %v344 = vunpack.c.l.b16 %v309
        %v345 = vunpack.c.l.b16 %v310
        %v346 = vunpack.c.l.b16 %v311
        %v347 = vunpack.c.l.b16 %v312
        %v348 = vunpack.c.l.b16 %v313
        %v349 = vunpack.c.l.b16 %v314
        %v350 = vunpack.c.l.b16 %v315
        %v351 = vunpack.c.l.b16 %v316
        %v352 = vunpack.c.l.b16 %v317
        %v353 = vpack.c.b16 %v338, %v337
        %v354 = vpack.c.b16 %v340, %v339
        %v355 = vpack.c.b16 %v342, %v341
        %v356 = vpack.c.b16 %v344, %v343
        %v357 = vpack.c.b16 %v346, %v345
        %v358 = vpack.c.b16 %v348, %v347
        %v359 = vpack.c.b16 %v350, %v349
        %v360 = vpack.c.b16 %v352, %v351
        %369 = vmatpush.bf16.msra.mxu0 %v360
        %370 = vmatpush.bf16.msra.mxu0 %v359
        %371 = vmatpush.bf16.msra.mxu0 %v358
        %372 = vmatpush.bf16.msra.mxu0 %v357
        %373 = vmatpush.bf16.msra.mxu0 %v356
        %374 = vmatpush.bf16.msra.mxu0 %v355
        %375 = vmatpush.bf16.msra.mxu0 %v354
        %376 = vmatpush.bf16.msra.mxu0 %v353
        %377 = vmatmul.bf16.gmra.mxu0 %v319
        %v378 = vpop.f32.mrf.mxu0
        %v379 = vadd.f32 %v320, %v378
        %v380 = vpop.f32.mrf.mxu0
        %v381 = vadd.f32 %v320, %v380
        %382 = vdwg.mxu0
        %v383 = vxor.u32 %v379, 2147483648
        %v384 = vxor.u32 %v381, 2147483648
        %v385 = vmul.f32 %v383, 1.442695
        %v386 = vpow.pop %v385
        %v387 = vmul.f32 %v384, 1.442695
        %v388 = vpow.pop %v387
        %v389 = vadd.f32 %v386, 1.0
        %v390 = vadd.f32 %v388, 1.0
        %v391 = vrcp.pop %v389
        %v392 = vmul.f32 %v389, %v391
        %v393 = vsub.f32 1.0, %v392
        %v394 = vmul.f32 %v391, %v393
        %v395 = vadd.f32 %v391, %v394
        %vm396 = vweird.f32 %v389
        %vm397 = vweird.f32 %v391
        %vm398 = vmor %vm396, %vm397
        %v399 = vsel %vm398, %v391, %v395
        %v400 = vand.u32 2147483647, %v389
        %vm401 = vcmp.eq.f32.partialorder %v400, 8.507059e+37
        %v402 = vand.u32 %v389, 2147483648
        %v403 = vor.u32 1.1754944e-38, %v402
        %v404 = vsel %vm401, %v403, %v399
        %v405 = vmul.f32 1.0, %v404
        %v406 = vrcp.pop %v390
        %v407 = vmul.f32 %v390, %v406
        %v408 = vsub.f32 1.0, %v407
        %v409 = vmul.f32 %v406, %v408
        %v410 = vadd.f32 %v406, %v409
        %vm411 = vweird.f32 %v390
        %vm412 = vweird.f32 %v406
        %vm413 = vmor %vm411, %vm412
        %v414 = vsel %vm413, %v406, %v410
        %v415 = vand.u32 2147483647, %v390
        %vm416 = vcmp.eq.f32.partialorder %v415, 8.507059e+37
        %v417 = vand.u32 %v390, 2147483648
        %v418 = vor.u32 1.1754944e-38, %v417
        %v419 = vsel %vm416, %v418, %v414
        %v420 = vmul.f32 1.0, %v419
        %v421 = vld [vmem:[#allocation5 + $0x50] sm:$0xf]
        %v422 = vld [vmem:[#allocation5 + $0x54] sm:$0xf]
        %v423 = vld [vmem:[#allocation5 + $0x58] sm:$0xf]
        %v424 = vld [vmem:[#allocation5 + $0x5c] sm:$0xf]
        %v425 = vld [vmem:[#allocation5 + $0x60] sm:$0xf]
        %v426 = vld [vmem:[#allocation5 + $0x64] sm:$0xf]
        %v427 = vld [vmem:[#allocation5 + $0x68] sm:$0xf]
        %v428 = vld [vmem:[#allocation5 + $0x6c] sm:$0xf]
        %v429 = vld [vmem:[#allocation5 + $0x70] sm:$0xf]
        %v430 = vld [vmem:[#allocation5 + $0x74] sm:$0xf]
        %v431 = vld [vmem:[#allocation5 + $0x78] sm:$0xf]
        %v432 = vld [vmem:[#allocation5 + $0x7c] sm:$0xf]
        %v433 = vld [vmem:[#allocation5 + $0x80] sm:$0xf]
        %v434 = vld [vmem:[#allocation5 + $0x84] sm:$0xf]
        %v435 = vld [vmem:[#allocation5 + $0x88] sm:$0xf]
        %v436 = vld [vmem:[#allocation5 + $0x8c] sm:$0xf]
        %v437 = vld [vmem:[#allocation7 + $0x2] sm:$0x1]
        %v438 = vpack.c.bf16 %v420, %v405
        %v439 = vperm.slane %v437, 0
        %v456 = vunpack.c.l.b16 %v421
        %v457 = vunpack.c.l.b16 %v422
        %v458 = vunpack.c.l.b16 %v423
        %v459 = vunpack.c.l.b16 %v424
        %v460 = vunpack.c.l.b16 %v425
        %v461 = vunpack.c.l.b16 %v426
        %v462 = vunpack.c.l.b16 %v427
        %v463 = vunpack.c.l.b16 %v428
        %v464 = vunpack.c.l.b16 %v429
        %v465 = vunpack.c.l.b16 %v430
        %v466 = vunpack.c.l.b16 %v431
        %v467 = vunpack.c.l.b16 %v432
        %v468 = vunpack.c.l.b16 %v433
        %v469 = vunpack.c.l.b16 %v434
        %v470 = vunpack.c.l.b16 %v435
        %v471 = vunpack.c.l.b16 %v436
        %v472 = vpack.c.b16 %v457, %v456
        %v473 = vpack.c.b16 %v459, %v458
        %v474 = vpack.c.b16 %v461, %v460
        %v475 = vpack.c.b16 %v463, %v462
        %v476 = vpack.c.b16 %v465, %v464
        %v477 = vpack.c.b16 %v467, %v466
        %v478 = vpack.c.b16 %v469, %v468
        %v479 = vpack.c.b16 %v471, %v470
        %488 = vmatpush.bf16.msra.mxu0 %v479
        %489 = vmatpush.bf16.msra.mxu0 %v478
        %490 = vmatpush.bf16.msra.mxu0 %v477
        %491 = vmatpush.bf16.msra.mxu0 %v476
        %492 = vmatpush.bf16.msra.mxu0 %v475
        %493 = vmatpush.bf16.msra.mxu0 %v474
        %494 = vmatpush.bf16.msra.mxu0 %v473
        %495 = vmatpush.bf16.msra.mxu0 %v472
        %496 = vmatmul.bf16.gmra.mxu0 %v438
        %v497 = vpop.f32.mrf.mxu0
        %v498 = vadd.f32 %v439, %v497
        %v499 = vpop.f32.mrf.mxu0
        %v500 = vadd.f32 %v439, %v499
        %501 = vdwg.mxu0
        %v502 = vxor.u32 %v498, 2147483648
        %v503 = vxor.u32 %v500, 2147483648
        %v504 = vmul.f32 %v502, 1.442695
        %v505 = vpow.pop %v504
        %v506 = vmul.f32 %v503, 1.442695
        %v507 = vpow.pop %v506
        %v508 = vadd.f32 %v505, 1.0
        %v509 = vadd.f32 %v507, 1.0
        %v510 = vrcp.pop %v508
        %v511 = vmul.f32 %v508, %v510
        %v512 = vsub.f32 1.0, %v511
        %v513 = vmul.f32 %v510, %v512
        %v514 = vadd.f32 %v510, %v513
        %vm515 = vweird.f32 %v508
        %vm516 = vweird.f32 %v510
        %vm517 = vmor %vm515, %vm516
        %v518 = vsel %vm517, %v510, %v514
        %v519 = vand.u32 2147483647, %v508
        %vm520 = vcmp.eq.f32.partialorder %v519, 8.507059e+37
        %v521 = vand.u32 %v508, 2147483648
        %v522 = vor.u32 1.1754944e-38, %v521
        %v523 = vsel %vm520, %v522, %v518
        %v524 = vmul.f32 1.0, %v523
        %v525 = vrcp.pop %v509
        %v526 = vmul.f32 %v509, %v525
        %v527 = vsub.f32 1.0, %v526
        %v528 = vmul.f32 %v525, %v527
        %v529 = vadd.f32 %v525, %v528
        %vm530 = vweird.f32 %v509
        %vm531 = vweird.f32 %v525
        %vm532 = vmor %vm530, %vm531
        %v533 = vsel %vm532, %v525, %v529
        %v534 = vand.u32 2147483647, %v509
        %vm535 = vcmp.eq.f32.partialorder %v534, 8.507059e+37
        %v536 = vand.u32 %v509, 2147483648
        %v537 = vor.u32 1.1754944e-38, %v536
        %v538 = vsel %vm535, %v537, %v533
        %v539 = vmul.f32 1.0, %v538
        %v540 = vld [vmem:[#allocation5 + $0x90] sm:$0xf]
        %v541 = vld [vmem:[#allocation5 + $0x94] sm:$0xf]
        %v542 = vld [vmem:[#allocation5 + $0x98] sm:$0xf]
        %v543 = vld [vmem:[#allocation5 + $0x9c] sm:$0xf]
        %v544 = vld [vmem:[#allocation5 + $0xa0] sm:$0xf]
        %v545 = vld [vmem:[#allocation5 + $0xa4] sm:$0xf]
        %v546 = vld [vmem:[#allocation5 + $0xa8] sm:$0xf]
        %v547 = vld [vmem:[#allocation5 + $0xac] sm:$0xf]
        %v548 = vld [vmem:[#allocation5 + $0xb0] sm:$0xf]
        %v549 = vld [vmem:[#allocation5 + $0xb4] sm:$0xf]
        %v550 = vld [vmem:[#allocation5 + $0xb8] sm:$0xf]
        %v551 = vld [vmem:[#allocation5 + $0xbc] sm:$0xf]
        %v552 = vld [vmem:[#allocation5 + $0xc0] sm:$0xf]
        %v553 = vld [vmem:[#allocation5 + $0xc4] sm:$0xf]
        %v554 = vld [vmem:[#allocation5 + $0xc8] sm:$0xf]
        %v555 = vld [vmem:[#allocation5 + $0xcc] sm:$0xf]
        %v556 = vld [vmem:[#allocation7 + $0x3] sm:$0x1]
        %v557 = vpack.c.bf16 %v539, %v524
        %v558 = vperm.slane %v556, 0
        %v575 = vunpack.c.l.b16 %v540
        %v576 = vunpack.c.l.b16 %v541
        %v577 = vunpack.c.l.b16 %v542
        %v578 = vunpack.c.l.b16 %v543
        %v579 = vunpack.c.l.b16 %v544
        %v580 = vunpack.c.l.b16 %v545
        %v581 = vunpack.c.l.b16 %v546
        %v582 = vunpack.c.l.b16 %v547
        %v583 = vunpack.c.l.b16 %v548
        %v584 = vunpack.c.l.b16 %v549
        %v585 = vunpack.c.l.b16 %v550
        %v586 = vunpack.c.l.b16 %v551
        %v587 = vunpack.c.l.b16 %v552
        %v588 = vunpack.c.l.b16 %v553
        %v589 = vunpack.c.l.b16 %v554
        %v590 = vunpack.c.l.b16 %v555
        %v591 = vpack.c.b16 %v576, %v575
        %v592 = vpack.c.b16 %v578, %v577
        %v593 = vpack.c.b16 %v580, %v579
        %v594 = vpack.c.b16 %v582, %v581
        %v595 = vpack.c.b16 %v584, %v583
        %v596 = vpack.c.b16 %v586, %v585
        %v597 = vpack.c.b16 %v588, %v587
        %v598 = vpack.c.b16 %v590, %v589
        %607 = vmatpush.bf16.msra.mxu0 %v598
        %608 = vmatpush.bf16.msra.mxu0 %v597
        %609 = vmatpush.bf16.msra.mxu0 %v596
        %610 = vmatpush.bf16.msra.mxu0 %v595
        %611 = vmatpush.bf16.msra.mxu0 %v594
        %612 = vmatpush.bf16.msra.mxu0 %v593
        %613 = vmatpush.bf16.msra.mxu0 %v592
        %614 = vmatpush.bf16.msra.mxu0 %v591
        %615 = vmatmul.bf16.gmra.mxu0 %v557
        %v616 = vpop.f32.mrf.mxu0
        %v617 = vadd.f32 %v558, %v616
        %v618 = vpop.f32.mrf.mxu0
        %v619 = vadd.f32 %v558, %v618
        %620 = vdwg.mxu0
        %v621 = vxor.u32 %v617, 2147483648
        %v622 = vxor.u32 %v619, 2147483648
        %v623 = vmul.f32 %v621, 1.442695
        %v624 = vpow.pop %v623
        %v625 = vmul.f32 %v622, 1.442695
        %v626 = vpow.pop %v625
        %v627 = vadd.f32 %v624, 1.0
        %v628 = vadd.f32 %v626, 1.0
        %v629 = vrcp.pop %v627
        %v630 = vmul.f32 %v627, %v629
        %v631 = vsub.f32 1.0, %v630
        %v632 = vmul.f32 %v629, %v631
        %v633 = vadd.f32 %v629, %v632
        %vm634 = vweird.f32 %v627
        %vm635 = vweird.f32 %v629
        %vm636 = vmor %vm634, %vm635
        %v637 = vsel %vm636, %v629, %v633
        %v638 = vand.u32 2147483647, %v627
        %vm639 = vcmp.eq.f32.partialorder %v638, 8.507059e+37
        %v640 = vand.u32 %v627, 2147483648
        %v641 = vor.u32 1.1754944e-38, %v640
        %v642 = vsel %vm639, %v641, %v637
        %v643 = vmul.f32 1.0, %v642
        %v644 = vrcp.pop %v628
        %v645 = vmul.f32 %v628, %v644
        %v646 = vsub.f32 1.0, %v645
        %v647 = vmul.f32 %v644, %v646
        %v648 = vadd.f32 %v644, %v647
        %vm649 = vweird.f32 %v628
        %vm650 = vweird.f32 %v644
        %vm651 = vmor %vm649, %vm650
        %v652 = vsel %vm651, %v644, %v648
        %v653 = vand.u32 2147483647, %v628
        %vm654 = vcmp.eq.f32.partialorder %v653, 8.507059e+37
        %v655 = vand.u32 %v628, 2147483648
        %v656 = vor.u32 1.1754944e-38, %v655
        %v657 = vsel %vm654, %v656, %v652
        %v658 = vmul.f32 1.0, %v657
        %v659 = vld [vmem:[#allocation5 + $0xd0] sm:$0xf]
        %v660 = vld [vmem:[#allocation5 + $0xd4] sm:$0xf]
        %v661 = vld [vmem:[#allocation5 + $0xd8] sm:$0xf]
        %v662 = vld [vmem:[#allocation5 + $0xdc] sm:$0xf]
        %v663 = vld [vmem:[#allocation5 + $0xe0] sm:$0xf]
        %v664 = vld [vmem:[#allocation5 + $0xe4] sm:$0xf]
        %v665 = vld [vmem:[#allocation5 + $0xe8] sm:$0xf]
        %v666 = vld [vmem:[#allocation5 + $0xec] sm:$0xf]
        %v667 = vld [vmem:[#allocation5 + $0xf0] sm:$0xf]
        %v668 = vld [vmem:[#allocation5 + $0xf4] sm:$0xf]
        %v669 = vld [vmem:[#allocation5 + $0xf8] sm:$0xf]
        %v670 = vld [vmem:[#allocation5 + $0xfc] sm:$0xf]
        %v671 = vld [vmem:[#allocation5 + $0x100] sm:$0xf]
        %v672 = vld [vmem:[#allocation5 + $0x104] sm:$0xf]
        %v673 = vld [vmem:[#allocation5 + $0x108] sm:$0xf]
        %v674 = vld [vmem:[#allocation5 + $0x10c] sm:$0xf]
        %v675 = vld [vmem:[#allocation7 + $0x4] sm:$0x1]
        %v676 = vpack.c.bf16 %v658, %v643
        %v677 = vperm.slane %v675, 0
        %v694 = vunpack.c.l.b16 %v659
        %v695 = vunpack.c.l.b16 %v660
        %v696 = vunpack.c.l.b16 %v661
        %v697 = vunpack.c.l.b16 %v662
        %v698 = vunpack.c.l.b16 %v663
        %v699 = vunpack.c.l.b16 %v664
        %v700 = vunpack.c.l.b16 %v665
        %v701 = vunpack.c.l.b16 %v666
        %v702 = vunpack.c.l.b16 %v667
        %v703 = vunpack.c.l.b16 %v668
        %v704 = vunpack.c.l.b16 %v669
        %v705 = vunpack.c.l.b16 %v670
        %v706 = vunpack.c.l.b16 %v671
        %v707 = vunpack.c.l.b16 %v672
        %v708 = vunpack.c.l.b16 %v673
        %v709 = vunpack.c.l.b16 %v674
        %v710 = vpack.c.b16 %v695, %v694
        %v711 = vpack.c.b16 %v697, %v696
        %v712 = vpack.c.b16 %v699, %v698
        %v713 = vpack.c.b16 %v701, %v700
        %v714 = vpack.c.b16 %v703, %v702
        %v715 = vpack.c.b16 %v705, %v704
        %v716 = vpack.c.b16 %v707, %v706
        %v717 = vpack.c.b16 %v709, %v708
        %726 = vmatpush.bf16.msra.mxu0 %v717
        %727 = vmatpush.bf16.msra.mxu0 %v716
        %728 = vmatpush.bf16.msra.mxu0 %v715
        %729 = vmatpush.bf16.msra.mxu0 %v714
        %730 = vmatpush.bf16.msra.mxu0 %v713
        %731 = vmatpush.bf16.msra.mxu0 %v712
        %732 = vmatpush.bf16.msra.mxu0 %v711
        %733 = vmatpush.bf16.msra.mxu0 %v710
        %734 = vmatmul.bf16.gmra.mxu0 %v676
        %v735 = vpop.f32.mrf.mxu0
        %v736 = vadd.f32 %v677, %v735
        %v737 = vpop.f32.mrf.mxu0
        %v738 = vadd.f32 %v677, %v737
        %739 = vdwg.mxu0
        %v740 = vxor.u32 %v736, 2147483648
        %v741 = vxor.u32 %v738, 2147483648
        %v742 = vmul.f32 %v740, 1.442695
        %v743 = vpow.pop %v742
        %v744 = vmul.f32 %v741, 1.442695
        %v745 = vpow.pop %v744
        %v746 = vadd.f32 %v743, 1.0
        %v747 = vadd.f32 %v745, 1.0
        %v748 = vrcp.pop %v746
        %v749 = vmul.f32 %v746, %v748
        %v750 = vsub.f32 1.0, %v749
        %v751 = vmul.f32 %v748, %v750
        %v752 = vadd.f32 %v748, %v751
        %vm753 = vweird.f32 %v746
        %vm754 = vweird.f32 %v748
        %vm755 = vmor %vm753, %vm754
        %v756 = vsel %vm755, %v748, %v752
        %v757 = vand.u32 2147483647, %v746
        %vm758 = vcmp.eq.f32.partialorder %v757, 8.507059e+37
        %v759 = vand.u32 %v746, 2147483648
        %v760 = vor.u32 1.1754944e-38, %v759
        %v761 = vsel %vm758, %v760, %v756
        %v762 = vmul.f32 1.0, %v761
        %v763 = vrcp.pop %v747
        %v764 = vmul.f32 %v747, %v763
        %v765 = vsub.f32 1.0, %v764
        %v766 = vmul.f32 %v763, %v765
        %v767 = vadd.f32 %v763, %v766
        %vm768 = vweird.f32 %v747
        %vm769 = vweird.f32 %v763
        %vm770 = vmor %vm768, %vm769
        %v771 = vsel %vm770, %v763, %v767
        %v772 = vand.u32 2147483647, %v747
        %vm773 = vcmp.eq.f32.partialorder %v772, 8.507059e+37
        %v774 = vand.u32 %v747, 2147483648
        %v775 = vor.u32 1.1754944e-38, %v774
        %v776 = vsel %vm773, %v775, %v771
        %v777 = vmul.f32 1.0, %v776
        %v778 = vld [vmem:[#allocation5 + $0x110] sm:$0xf]
        %v779 = vld [vmem:[#allocation5 + $0x114] sm:$0xf]
        %v780 = vld [vmem:[#allocation5 + $0x118] sm:$0xf]
        %v781 = vld [vmem:[#allocation5 + $0x11c] sm:$0xf]
        %v782 = vld [vmem:[#allocation5 + $0x120] sm:$0xf]
        %v783 = vld [vmem:[#allocation5 + $0x124] sm:$0xf]
        %v784 = vld [vmem:[#allocation5 + $0x128] sm:$0xf]
        %v785 = vld [vmem:[#allocation5 + $0x12c] sm:$0xf]
        %v786 = vld [vmem:[#allocation5 + $0x130] sm:$0xf]
        %v787 = vld [vmem:[#allocation5 + $0x134] sm:$0xf]
        %v788 = vld [vmem:[#allocation5 + $0x138] sm:$0xf]
        %v789 = vld [vmem:[#allocation5 + $0x13c] sm:$0xf]
        %v790 = vld [vmem:[#allocation5 + $0x140] sm:$0xf]
        %v791 = vld [vmem:[#allocation5 + $0x144] sm:$0xf]
        %v792 = vld [vmem:[#allocation5 + $0x148] sm:$0xf]
        %v793 = vld [vmem:[#allocation5 + $0x14c] sm:$0xf]
        %v794 = vld [vmem:[#allocation7 + $0x5] sm:$0x1]
        %v795 = vpack.c.bf16 %v777, %v762
        %v796 = vperm.slane %v794, 0
        %v813 = vunpack.c.l.b16 %v778
        %v814 = vunpack.c.l.b16 %v779
        %v815 = vunpack.c.l.b16 %v780
        %v816 = vunpack.c.l.b16 %v781
        %v817 = vunpack.c.l.b16 %v782
        %v818 = vunpack.c.l.b16 %v783
        %v819 = vunpack.c.l.b16 %v784
        %v820 = vunpack.c.l.b16 %v785
        %v821 = vunpack.c.l.b16 %v786
        %v822 = vunpack.c.l.b16 %v787
        %v823 = vunpack.c.l.b16 %v788
        %v824 = vunpack.c.l.b16 %v789
        %v825 = vunpack.c.l.b16 %v790
        %v826 = vunpack.c.l.b16 %v791
        %v827 = vunpack.c.l.b16 %v792
        %v828 = vunpack.c.l.b16 %v793
        %v829 = vpack.c.b16 %v814, %v813
        %v830 = vpack.c.b16 %v816, %v815
        %v831 = vpack.c.b16 %v818, %v817
        %v832 = vpack.c.b16 %v820, %v819
        %v833 = vpack.c.b16 %v822, %v821
        %v834 = vpack.c.b16 %v824, %v823
        %v835 = vpack.c.b16 %v826, %v825
        %v836 = vpack.c.b16 %v828, %v827
        %845 = vmatpush.bf16.msra.mxu0 %v836
        %846 = vmatpush.bf16.msra.mxu0 %v835
        %847 = vmatpush.bf16.msra.mxu0 %v834
        %848 = vmatpush.bf16.msra.mxu0 %v833
        %849 = vmatpush.bf16.msra.mxu0 %v832
        %850 = vmatpush.bf16.msra.mxu0 %v831
        %851 = vmatpush.bf16.msra.mxu0 %v830
        %852 = vmatpush.bf16.msra.mxu0 %v829
        %853 = vmatmul.bf16.gmra.mxu0 %v795
        %v854 = vpop.f32.mrf.mxu0
        %v855 = vadd.f32 %v796, %v854
        %v856 = vpop.f32.mrf.mxu0
        %v857 = vadd.f32 %v796, %v856
        %858 = vdwg.mxu0
        %859 = vmax.xlane.f32.xlu0 %v855
        %v860 = vpop.xlane.xlu0 %859
        %861 = vmax.xlane.f32.xlu0 %v857
        %v862 = vpop.xlane.xlu0 %861
        %v863 = vsub.f32 %v855, %v860
        %v864 = vsub.f32 %v857, %v862
        %v865 = vmul.f32 %v863, 1.442695
        %v866 = vpow.pop %v865
        %v867 = vmul.f32 %v864, 1.442695
        %v868 = vpow.pop %v867
        %869 = vadd.xlane.f32.xlu0 %v866
        %v870 = vpop.xlane.xlu0 %869
        %871 = vadd.xlane.f32.xlu0 %v868
        %v872 = vpop.xlane.xlu0 %871
        %v873 = vlog2.pop %v870
        %v874 = vmul.f32 %v873, 0.6931472
        %v875 = vlog2.pop %v872
        %v876 = vmul.f32 %v875, 0.6931472
        %v877 = vsub.f32 %v863, %v874
        %v878 = vsub.f32 %v864, %v876
        %879 = vst [vmem:[%s221] sm:$0xff] %v877
        %880 = vst [vmem:[%s221 + $0x8] sm:$0xff] %v878
        %s881 = sand.u32 %s97, 1
        %s882 = scalar_lea.sflag [#allocation4], %s881
        %s883 = sand.u32 %s97, 1
        %s884 = smul.addr %s883, 16
        %s885 = scalar_lea.vmem [#allocation8], %s884
        // Predicated region
        $region45: #{tpu_custom_call.1} parent=31 // pred_check
          %p886 = pneg %p107
        $region46: #{tpu_custom_call.1} parent=31 // pred_check_branch
          %888 = sbr.rel (%p886) target = $region48
        $region47: #{tpu_custom_call.1} parent=31 // pred_region
          %s889 = smul.u32 2, %s21
          %891 = vsyncadd %s882, 0
          %s892 = smul.addr %s889, 8
          %s893 = scalar_lea.hbm %s3, %s892
          %s894 = sshll.u32 %s885, 4
          %s895 = int_to_ptr.vmem [resolvable:$true] %s894
          %s896 = sshll.u32 %s893, 4
          %s897 = int_to_ptr.hbm [resolvable:$true] %s896
          %902 = dma.vmem_to_hbm [thread:$0]  %s895, 256, %s897, %s882, 128, 128, 8
        $region48: #{tpu_custom_call.1} parent=31 // pred_fallthru
          _
      $region32: #{tpu_custom_call.1} parent=5 // pred_fallthru
        _
      %p903 = scmp.le.s32.totalorder 2, %s16
      // Predicated region
      $region49: #{tpu_custom_call.1} parent=5 // pred_check
        %p904 = pneg %p903
      $region50: #{tpu_custom_call.1} parent=5 // pred_check_branch
        %906 = sbr.rel (%p904) target = $region52
      $region51: #{tpu_custom_call.1} parent=5 // pred_region
        %s907 = ssub.s32 %s16, 2
        // Predicated region
        $region53: #{tpu_custom_call.1} parent=51 // pred_check
          %p908 = pneg %p113
        $region54: #{tpu_custom_call.1} parent=51 // pred_check_branch
          %910 = sbr.rel (%p908) target = $region56
        $region55: #{tpu_custom_call.1} parent=51 // pred_region
          %s911 = sand.u32 %s98, 1
          %s912 = scalar_lea.sflag [#allocation4], %s911
          %s913 = sand.u32 %s98, 1
          %s914 = smul.addr %s913, 16
          %s915 = scalar_lea.vmem [#allocation8], %s914
          %917 = dma.done %s912, 256
        $region56: #{tpu_custom_call.1} parent=51 // pred_fallthru
          _
      $region52: #{tpu_custom_call.1} parent=5 // pred_fallthru
        _
    $region6: #{tpu_custom_call.1} parent=1 // loop_footer
      %s20 = sadd.s32 1, %s16
    $region7: #{tpu_custom_call.1} parent=1 // loop_footer_branch
      %15 = sbr.rel target = $region3
    $region8: #{tpu_custom_call.1} parent=1 // loop_exit
      _
    %918 = vsyncpa [#allocation3], 1
    %s919 = scalar_lea.sflag [#allocation3], 1
    %920 = vsyncpa %s919, 1
    %921 = vsyncpa [#allocation6], 1
    %922 = vsyncpa [#allocation4], 1
    %s923 = scalar_lea.sflag [#allocation4], 1
    %924 = vsyncpa %s923, 1

</llo_original>
